<compile_context>
chip_gen: v6e
topology: v6e:2x2x1
jax: 0.10.0
libtpu: 0.0.40
codegen_flags: <defaults>
</compile_context>

<pallas_src>
import functools

import jax
import jax.numpy as jnp
from jax.experimental import pallas as pl
from jax.experimental.pallas import tpu as pltpu

LEAKY_SLOPE = 0.01  # nn.LeakyReLU default


def _leaky_relu(x):
    return jnp.where(x >= 0, x, LEAKY_SLOPE * x)


def _round_up(n, m):
    return ((n + m - 1) // m) * m


def dueling_dqn_kernel(
    x_ref,
    w1_ref, b1_ref, w2_ref, b2_ref,   # hidden MLP: Linear+LeakyReLU, Linear
    hw1_ref, hb1_ref,                 # fused [value | advantage] head first layers
    vw2_ref, vb2_ref,                 # value final layer as a lane row + (1,1) bias
    aw2_ref, ab2_ref,                 # advantage final layer, lane-padded to 128*n
    q_ref,
    *, vh_pad, inv_n_actions,
):
    cdt = w1_ref.dtype  # matmul compute dtype (f32 or bf16); accumulation stays f32

    x = x_ref[...]

    # hidden_mlp: Linear -> LeakyReLU -> Linear (no activation on last layer)
    h = jnp.dot(x, w1_ref[...], preferred_element_type=jnp.float32) + b1_ref[...]
    h = _leaky_relu(h)
    h = jnp.dot(h.astype(cdt), w2_ref[...], preferred_element_type=jnp.float32) + b2_ref[...]

    # Fused first layers of both heads: one MXU push instead of two.
    hv = jnp.dot(h.astype(cdt), hw1_ref[...], preferred_element_type=jnp.float32) + hb1_ref[...]
    hv = _leaky_relu(hv)
    v_hid = hv[:, :vh_pad]   # value-head hidden      (vreg-aligned slice)
    a_hid = hv[:, vh_pad:]   # advantage-head hidden  (vreg-aligned slice)

    # Value final layer: (B,Vh)@(Vh,1) replaced by VPU mul + cross-lane reduce.
    v = jnp.sum(v_hid * vw2_ref[...], axis=-1, keepdims=True) + vb2_ref[...]

    # Advantage final layer; padded output columns are exactly zero by construction.
    a = jnp.dot(a_hid.astype(cdt), aw2_ref[...], preferred_element_type=jnp.float32) + ab2_ref[...]

    # Dueling combine: q = v + a - mean(a) over the *real* actions (pad cols are 0).
    mean_a = jnp.sum(a, axis=-1, keepdims=True) * inv_n_actions
    q_ref[...] = (v + a - mean_a).astype(q_ref.dtype)


def pack_params(p, compute_dtype=jnp.float32):
    """Pre-pack raw params into the fused / lane-padded layout the kernel uses.

    Set compute_dtype=jnp.bfloat16 on v6e/v7x to run the matmuls in bf16
    (accumulation and elementwise math stay f32 inside the kernel).
    """
    Vh = p["vw1"].shape[1]
    Ah = p["aw1"].shape[1]
    A = p["aw2"].shape[1]
    H1 = p["w2"].shape[1]

    VhP = _round_up(Vh, 128)
    AhP = _round_up(Ah, 128)
    NP = _round_up(A, 128)

    # Fused [value | advantage] head first-layer weight/bias (zero padded).
    hw1 = jnp.zeros((H1, VhP + AhP), jnp.float32)
    hw1 = hw1.at[:, :Vh].set(p["vw1"]).at[:, VhP:VhP + Ah].set(p["aw1"])
    hb1 = jnp.zeros((1, VhP + AhP), jnp.float32)
    hb1 = hb1.at[:, :Vh].set(p["vb1"]).at[:, VhP:VhP + Ah].set(p["ab1"])

    # Value final layer as a broadcast row (lane-reduce in the kernel).
    vw2_row = jnp.zeros((1, VhP), jnp.float32).at[:, :Vh].set(p["vw2"].T)

    # Advantage final layer, padded lane-dense.
    aw2 = jnp.zeros((AhP, NP), jnp.float32).at[:Ah, :A].set(p["aw2"])
    ab2 = jnp.zeros((1, NP), jnp.float32).at[:, :A].set(p["ab2"])

    return dict(
        w1=p["w1"].astype(compute_dtype), b1=p["b1"].astype(jnp.float32),
        w2=p["w2"].astype(compute_dtype), b2=p["b2"].astype(jnp.float32),
        hw1=hw1.astype(compute_dtype), hb1=hb1,
        vw2=vw2_row, vb2=p["vb2"].astype(jnp.float32),
        aw2=aw2.astype(compute_dtype), ab2=ab2,
        meta=dict(vh_pad=VhP, n_actions=A, np_pad=NP),
    )


def dueling_dqn_forward(x, packed, *, tile_b=256):
    meta = packed["meta"]
    VhP, A, NP = meta["vh_pad"], meta["n_actions"], meta["np_pad"]
    B, D = x.shape
    cdt = packed["w1"].dtype

    # Batch tiling: TB multiple of 8 (f32 sublane); pad B up to a multiple of TB.
    TB = min(tile_b, _round_up(B, 8))
    Bp = _round_up(B, TB)
    xp = x.astype(cdt)
    if Bp != B:
        xp = jnp.pad(xp, ((0, Bp - B), (0, 0)))

    weight_names = ("w1", "b1", "w2", "b2", "hw1", "hb1", "vw2", "vb2", "aw2", "ab2")
    weights = [packed[k] for k in weight_names]

    # Advisory cost estimate for XLA's scheduler.
    H0 = packed["w1"].shape[1]
    H1 = packed["w2"].shape[1]
    head_w = packed["hw1"].shape[1]
    flops = 2 * Bp * (D * H0 + H0 * H1 + H1 * head_w + VhP + (head_w - VhP) * NP)
    bytes_accessed = (
        xp.size * xp.dtype.itemsize
        + sum(int(w.size) * w.dtype.itemsize for w in weights)
        + Bp * NP * 4
    )

    kernel = functools.partial(dueling_dqn_kernel, vh_pad=VhP, inv_n_actions=1.0 / A)

    q_pad = pl.pallas_call(
        kernel,
        out_shape=jax.ShapeDtypeStruct((Bp, NP), jnp.float32),
        grid=(Bp // TB,),
        in_specs=(
            [pl.BlockSpec((TB, D), lambda i: (i, 0))]                 # x: tiled on batch
            + [pl.BlockSpec(w.shape, lambda i: (0, 0)) for w in weights]  # weights: resident
        ),
        out_specs=pl.BlockSpec((TB, NP), lambda i: (i, 0)),
        compiler_params=pltpu.CompilerParams(dimension_semantics=("parallel",)),
        cost_estimate=pl.CostEstimate(
            flops=int(flops), transcendentals=0, bytes_accessed=int(bytes_accessed)),
    )(xp, *weights)

    # Slice away batch padding and the lane padding of the q output.
    return q_pad[:B, :A]


def init_params(key, input_size, hidden_layers, v_net_layers, a_net_layers):
    # Mirrors: DuelingDQN(input_size, hidden_layers=[H0,H1],
    #                     v_net_layers=[H1, Vh, 1], a_net_layers=[H1, Ah, A])
    assert v_net_layers[0] == hidden_layers[-1]
    assert a_net_layers[0] == hidden_layers[-1]

    def linear(k, n_in, n_out, scale=0.1):
        kw, kb = jax.random.split(k)
        w = scale * jax.random.normal(kw, (n_in, n_out), jnp.float32)
        b = scale * jax.random.normal(kb, (1, n_out), jnp.float32)  # (1, out) for broadcast
        return w, b

    ks = jax.random.split(key, 6)
    w1, b1 = linear(ks[0], input_size, hidden_layers[0])
    w2, b2 = linear(ks[1], hidden_layers[0], hidden_layers[1])
    vw1, vb1 = linear(ks[2], v_net_layers[0], v_net_layers[1])
    vw2, vb2 = linear(ks[3], v_net_layers[1], v_net_layers[2])
    aw1, ab1 = linear(ks[4], a_net_layers[0], a_net_layers[1])
    aw2, ab2 = linear(ks[5], a_net_layers[1], a_net_layers[2])
    return dict(
        w1=w1, b1=b1, w2=w2, b2=b2,
        vw1=vw1, vb1=vb1, vw2=vw2, vb2=vb2,
        aw1=aw1, ab1=ab1, aw2=aw2, ab2=ab2,
    )


def reference_forward(x, p):
    # Pure-JAX reference with identical semantics (for a sanity check).
    h = _leaky_relu(x @ p["w1"] + p["b1"])
    h = h @ p["w2"] + p["b2"]
    v = _leaky_relu(h @ p["vw1"] + p["vb1"]) @ p["vw2"] + p["vb2"]
    a = _leaky_relu(h @ p["aw1"] + p["ab1"]) @ p["aw2"] + p["ab2"]
    return v + a - jnp.mean(a, axis=1, keepdims=True)


if __name__ == "__main__":
    key = jax.random.PRNGKey(0)
    kx, kp = jax.random.split(key)

    B = 2
    input_size = 32
    hidden_layers = [64, 64]
    v_net_layers = [64, 32, 1]
    a_net_layers = [64, 32, 4]

    x = jax.random.normal(kx, (B, input_size), jnp.float32)
    params = init_params(kp, input_size, hidden_layers, v_net_layers, a_net_layers)

    # f32 compute for tight correctness check; use compute_dtype=jnp.bfloat16 on v6e/v7x.
    packed = pack_params(params, compute_dtype=jnp.float32)

    q = dueling_dqn_forward(x, packed)
    q = jax.block_until_ready(q)

    q_ref = reference_forward(x, params)
    assert q.shape == (B, a_net_layers[-1])
    assert jnp.allclose(q, q_ref, atol=1e-4, rtol=1e-4), float(jnp.max(jnp.abs(q - q_ref)))

    print("KERNEL_OK")
</pallas_src>

<mosaic_0001>
module attributes {stable_mosaic.version = 11 : i64} {
  func.func @dueling_dqn_kernel(%arg0: i32, %arg1: memref<8x32xf32, #tpu.memory_space<vmem>>, %arg2: memref<32x64xf32, #tpu.memory_space<vmem>>, %arg3: memref<1x64xf32, #tpu.memory_space<vmem>>, %arg4: memref<64x64xf32, #tpu.memory_space<vmem>>, %arg5: memref<1x64xf32, #tpu.memory_space<vmem>>, %arg6: memref<64x256xf32, #tpu.memory_space<vmem>>, %arg7: memref<1x256xf32, #tpu.memory_space<vmem>>, %arg8: memref<1x128xf32, #tpu.memory_space<vmem>>, %arg9: memref<1x1xf32, #tpu.memory_space<vmem>>, %arg10: memref<128x128xf32, #tpu.memory_space<vmem>>, %arg11: memref<1x128xf32, #tpu.memory_space<vmem>>, %arg12: memref<8x128xf32, #tpu.memory_space<vmem>>) attributes {dimension_semantics = [#tpu.dimension_semantics<parallel>], iteration_bounds = array<i64: 1>, scalar_prefetch = 0 : i64, scratch_operands = 0 : i64, tpu.core_type = #tpu.core_type<tc>, window_params = [{transform_indices = @transform_0, window_bounds = array<i64: 8, 32>}, {pipeline_mode = #tpu.pipeline_mode<synchronous>, transform_indices = @transform_1, window_bounds = array<i64: 32, 64>}, {pipeline_mode = #tpu.pipeline_mode<synchronous>, transform_indices = @transform_2, window_bounds = array<i64: 1, 64>}, {pipeline_mode = #tpu.pipeline_mode<synchronous>, transform_indices = @transform_3, window_bounds = array<i64: 64, 64>}, {pipeline_mode = #tpu.pipeline_mode<synchronous>, transform_indices = @transform_4, window_bounds = array<i64: 1, 64>}, {pipeline_mode = #tpu.pipeline_mode<synchronous>, transform_indices = @transform_5, window_bounds = array<i64: 64, 256>}, {pipeline_mode = #tpu.pipeline_mode<synchronous>, transform_indices = @transform_6, window_bounds = array<i64: 1, 256>}, {pipeline_mode = #tpu.pipeline_mode<synchronous>, transform_indices = @transform_7, window_bounds = array<i64: 1, 128>}, {pipeline_mode = #tpu.pipeline_mode<synchronous>, transform_indices = @transform_8, window_bounds = array<i64: 1, 1>}, {pipeline_mode = #tpu.pipeline_mode<synchronous>, transform_indices = @transform_9, window_bounds = array<i64: 128, 128>}, {pipeline_mode = #tpu.pipeline_mode<synchronous>, transform_indices = @transform_10, window_bounds = array<i64: 1, 128>}, {transform_indices = @transform_11, window_bounds = array<i64: 8, 128>}]} {
    %c0 = arith.constant 0 : index
    %c0_0 = arith.constant 0 : index
    %0 = vector.load %arg1[%c0, %c0_0] : memref<8x32xf32, #tpu.memory_space<vmem>>, vector<8x32xf32>
    %c0_1 = arith.constant 0 : index
    %c0_2 = arith.constant 0 : index
    %1 = vector.load %arg2[%c0_1, %c0_2] : memref<32x64xf32, #tpu.memory_space<vmem>>, vector<32x64xf32>
    %cst = arith.constant dense<0.000000e+00> : vector<8x64xf32>
    %2 = tpu.matmul %0, %1, %cst {dimension_numbers = #tpu.dot_dimension_numbers<[1], [0], [0], [1], [0, 0, 1, 1], [], []>} : vector<8x32xf32>, vector<32x64xf32>, vector<8x64xf32> -> vector<8x64xf32>
    %c0_3 = arith.constant 0 : index
    %c0_4 = arith.constant 0 : index
    %3 = vector.load %arg3[%c0_3, %c0_4] : memref<1x64xf32, #tpu.memory_space<vmem>>, vector<1x64xf32>
    %4 = vector.broadcast %3 : vector<1x64xf32> to vector<8x64xf32>
    %5 = arith.addf %2, %4 : vector<8x64xf32>
    %cst_5 = arith.constant 0.000000e+00 : f32
    %6 = vector.broadcast %cst_5 : f32 to vector<8x64xf32>
    %7 = arith.cmpf oge, %5, %6 : vector<8x64xf32>
    %cst_6 = arith.constant 0.00999999977 : f32
    %8 = vector.broadcast %cst_6 : f32 to vector<8x64xf32>
    %9 = arith.mulf %8, %5 : vector<8x64xf32>
    %10 = arith.select %7, %5, %9 : vector<8x64xi1>, vector<8x64xf32>
    %c0_7 = arith.constant 0 : index
    %c0_8 = arith.constant 0 : index
    %11 = vector.load %arg4[%c0_7, %c0_8] : memref<64x64xf32, #tpu.memory_space<vmem>>, vector<64x64xf32>
    %cst_9 = arith.constant dense<0.000000e+00> : vector<8x64xf32>
    %12 = tpu.matmul %10, %11, %cst_9 {dimension_numbers = #tpu.dot_dimension_numbers<[1], [0], [0], [1], [0, 0, 1, 1], [], []>} : vector<8x64xf32>, vector<64x64xf32>, vector<8x64xf32> -> vector<8x64xf32>
    %c0_10 = arith.constant 0 : index
    %c0_11 = arith.constant 0 : index
    %13 = vector.load %arg5[%c0_10, %c0_11] : memref<1x64xf32, #tpu.memory_space<vmem>>, vector<1x64xf32>
    %14 = vector.broadcast %13 : vector<1x64xf32> to vector<8x64xf32>
    %15 = arith.addf %12, %14 : vector<8x64xf32>
    %c0_12 = arith.constant 0 : index
    %c0_13 = arith.constant 0 : index
    %16 = vector.load %arg6[%c0_12, %c0_13] : memref<64x256xf32, #tpu.memory_space<vmem>>, vector<64x256xf32>
    %cst_14 = arith.constant dense<0.000000e+00> : vector<8x256xf32>
    %17 = tpu.matmul %15, %16, %cst_14 {dimension_numbers = #tpu.dot_dimension_numbers<[1], [0], [0], [1], [0, 0, 1, 1], [], []>} : vector<8x64xf32>, vector<64x256xf32>, vector<8x256xf32> -> vector<8x256xf32>
    %c0_15 = arith.constant 0 : index
    %c0_16 = arith.constant 0 : index
    %18 = vector.load %arg7[%c0_15, %c0_16] : memref<1x256xf32, #tpu.memory_space<vmem>>, vector<1x256xf32>
    %19 = vector.broadcast %18 : vector<1x256xf32> to vector<8x256xf32>
    %20 = arith.addf %17, %19 : vector<8x256xf32>
    %cst_17 = arith.constant 0.000000e+00 : f32
    %21 = vector.broadcast %cst_17 : f32 to vector<8x256xf32>
    %22 = arith.cmpf oge, %20, %21 : vector<8x256xf32>
    %cst_18 = arith.constant 0.00999999977 : f32
    %23 = vector.broadcast %cst_18 : f32 to vector<8x256xf32>
    %24 = arith.mulf %23, %20 : vector<8x256xf32>
    %25 = arith.select %22, %20, %24 : vector<8x256xi1>, vector<8x256xf32>
    %26 = vector.extract_strided_slice %25 {offsets = [0, 0], sizes = [8, 128], strides = [1, 1]} : vector<8x256xf32> to vector<8x128xf32>
    %27 = vector.extract_strided_slice %25 {offsets = [0, 128], sizes = [8, 128], strides = [1, 1]} : vector<8x256xf32> to vector<8x128xf32>
    %c0_19 = arith.constant 0 : index
    %c0_20 = arith.constant 0 : index
    %28 = vector.load %arg8[%c0_19, %c0_20] : memref<1x128xf32, #tpu.memory_space<vmem>>, vector<1x128xf32>
    %29 = vector.broadcast %28 : vector<1x128xf32> to vector<8x128xf32>
    %30 = arith.mulf %26, %29 : vector<8x128xf32>
    %cst_21 = arith.constant dense<0.000000e+00> : vector<8xf32>
    %31 = vector.multi_reduction <add>, %30, %cst_21 [1] : vector<8x128xf32> to vector<8xf32>
    %32 = vector.shape_cast %31 : vector<8xf32> to vector<8x1xf32>
    %c0_22 = arith.constant 0 : index
    %c0_23 = arith.constant 0 : index
    %33 = vector.load %arg9[%c0_22, %c0_23] : memref<1x1xf32, #tpu.memory_space<vmem>>, vector<1x1xf32>
    %34 = vector.broadcast %33 : vector<1x1xf32> to vector<8x1xf32>
    %35 = arith.addf %32, %34 : vector<8x1xf32>
    %c0_24 = arith.constant 0 : index
    %c0_25 = arith.constant 0 : index
    %36 = vector.load %arg10[%c0_24, %c0_25] : memref<128x128xf32, #tpu.memory_space<vmem>>, vector<128x128xf32>
    %cst_26 = arith.constant dense<0.000000e+00> : vector<8x128xf32>
    %37 = tpu.matmul %27, %36, %cst_26 {dimension_numbers = #tpu.dot_dimension_numbers<[1], [0], [0], [1], [0, 0, 1, 1], [], []>} : vector<8x128xf32>, vector<128x128xf32>, vector<8x128xf32> -> vector<8x128xf32>
    %c0_27 = arith.constant 0 : index
    %c0_28 = arith.constant 0 : index
    %38 = vector.load %arg11[%c0_27, %c0_28] : memref<1x128xf32, #tpu.memory_space<vmem>>, vector<1x128xf32>
    %39 = vector.broadcast %38 : vector<1x128xf32> to vector<8x128xf32>
    %40 = arith.addf %37, %39 : vector<8x128xf32>
    %cst_29 = arith.constant dense<0.000000e+00> : vector<8xf32>
    %41 = vector.multi_reduction <add>, %40, %cst_29 [1] : vector<8x128xf32> to vector<8xf32>
    %42 = vector.shape_cast %41 : vector<8xf32> to vector<8x1xf32>
    %cst_30 = arith.constant 2.500000e-01 : f32
    %43 = vector.broadcast %cst_30 : f32 to vector<8x1xf32>
    %44 = arith.mulf %42, %43 : vector<8x1xf32>
    %45 = vector.broadcast %35 : vector<8x1xf32> to vector<8x128xf32>
    %46 = arith.addf %45, %40 : vector<8x128xf32>
    %47 = vector.broadcast %44 : vector<8x1xf32> to vector<8x128xf32>
    %48 = arith.subf %46, %47 : vector<8x128xf32>
    %c0_31 = arith.constant 0 : index
    %c0_32 = arith.constant 0 : index
    %49 = vector.load %arg12[%c0_31, %c0_32] : memref<8x128xf32, #tpu.memory_space<vmem>>, vector<8x128xf32>
    tpu.vector_store %arg12[%c0_31, %c0_32], %48 {strides = array<i32>} : memref<8x128xf32, #tpu.memory_space<vmem>>, vector<8x128xf32>,
    return
  }
  func.func @transform_0(%arg0: i32) -> (i32, i32) {
    %c0_i32 = arith.constant 0 : i32
    %c0_i32_0 = arith.constant 0 : i32
    return %arg0, %c0_i32 : i32, i32
  }
  func.func @transform_1(%arg0: i32) -> (i32, i32) {
    %c0_i32 = arith.constant 0 : i32
    %c0_i32_0 = arith.constant 0 : i32
    %c0_i32_1 = arith.constant 0 : i32
    return %c0_i32, %c0_i32_0 : i32, i32
  }
  func.func @transform_2(%arg0: i32) -> (i32, i32) {
    %c0_i32 = arith.constant 0 : i32
    %c0_i32_0 = arith.constant 0 : i32
    %c0_i32_1 = arith.constant 0 : i32
    return %c0_i32, %c0_i32_0 : i32, i32
  }
  func.func @transform_3(%arg0: i32) -> (i32, i32) {
    %c0_i32 = arith.constant 0 : i32
    %c0_i32_0 = arith.constant 0 : i32
    %c0_i32_1 = arith.constant 0 : i32
    return %c0_i32, %c0_i32_0 : i32, i32
  }
  func.func @transform_4(%arg0: i32) -> (i32, i32) {
    %c0_i32 = arith.constant 0 : i32
    %c0_i32_0 = arith.constant 0 : i32
    %c0_i32_1 = arith.constant 0 : i32
    return %c0_i32, %c0_i32_0 : i32, i32
  }
  func.func @transform_5(%arg0: i32) -> (i32, i32) {
    %c0_i32 = arith.constant 0 : i32
    %c0_i32_0 = arith.constant 0 : i32
    %c0_i32_1 = arith.constant 0 : i32
    return %c0_i32, %c0_i32_0 : i32, i32
  }
  func.func @transform_6(%arg0: i32) -> (i32, i32) {
    %c0_i32 = arith.constant 0 : i32
    %c0_i32_0 = arith.constant 0 : i32
    %c0_i32_1 = arith.constant 0 : i32
    return %c0_i32, %c0_i32_0 : i32, i32
  }
  func.func @transform_7(%arg0: i32) -> (i32, i32) {
    %c0_i32 = arith.constant 0 : i32
    %c0_i32_0 = arith.constant 0 : i32
    %c0_i32_1 = arith.constant 0 : i32
    return %c0_i32, %c0_i32_0 : i32, i32
  }
  func.func @transform_8(%arg0: i32) -> (i32, i32) {
    %c0_i32 = arith.constant 0 : i32
    %c0_i32_0 = arith.constant 0 : i32
    %c0_i32_1 = arith.constant 0 : i32
    return %c0_i32, %c0_i32_0 : i32, i32
  }
  func.func @transform_9(%arg0: i32) -> (i32, i32) {
    %c0_i32 = arith.constant 0 : i32
    %c0_i32_0 = arith.constant 0 : i32
    %c0_i32_1 = arith.constant 0 : i32
    return %c0_i32, %c0_i32_0 : i32, i32
  }
  func.func @transform_10(%arg0: i32) -> (i32, i32) {
    %c0_i32 = arith.constant 0 : i32
    %c0_i32_0 = arith.constant 0 : i32
    %c0_i32_1 = arith.constant 0 : i32
    return %c0_i32, %c0_i32_0 : i32, i32
  }
  func.func @transform_11(%arg0: i32) -> (i32, i32) {
    %c0_i32 = arith.constant 0 : i32
    %c0_i32_0 = arith.constant 0 : i32
    return %arg0, %c0_i32 : i32, i32
  }
}

</mosaic_0001>

<llo_original>
// kernel: tpu_custom_call.1
$region0: #{tpu_custom_call.1}
  #allocation0 [shape = 'u32[]', space=smem, size = 0x4, offset = 0x4, fixed_abs, tag = 'smem constant byte address 0x4 - core index']
  #allocation1 [shape = 'u32[144,128]{1,0:T(1,128)}', space=vmem, size = 0x12000, scoped, tag = 'internal scratch']
  #allocation2 [shape = 'f32[1,1]{1,0:T(1,128)S(1)}', space=vmem, size = 0x200, scoped, tag = 'scoped memory for tpu_custom_call.1']
  %s0 = inlined_call_operand.hbm [shape: f32[8,32], index: 0, kind: input, shape index: {}]
  %s1 = inlined_call_operand.hbm [shape: f32[32,64], index: 1, kind: input, shape index: {}]
  %s2 = inlined_call_operand.vmem [shape: f32[1,64], index: 2, kind: input, shape index: {}]
  %s3 = inlined_call_operand.hbm [shape: f32[64,64], index: 3, kind: input, shape index: {}]
  %s4 = inlined_call_operand.vmem [shape: f32[1,64], index: 4, kind: input, shape index: {}]
  %s5 = inlined_call_operand.hbm [shape: f32[64,256], index: 5, kind: input, shape index: {}]
  %s6 = inlined_call_operand.vmem [shape: f32[1,256], index: 6, kind: input, shape index: {}]
  %s7 = inlined_call_operand.vmem [shape: f32[1,128], index: 7, kind: input, shape index: {}]
  %s8 = inlined_call_operand.<no memory space> [shape: f32[1,1], index: 8, kind: input, shape index: {}]
  %s9 = inlined_call_operand.hbm [shape: f32[128,128], index: 9, kind: input, shape index: {}]
  %s10 = inlined_call_operand.vmem [shape: f32[1,128], index: 10, kind: input, shape index: {}]
  %s11 = inlined_call_operand.hbm [shape: f32[8,128], index: 11, kind: output, shape index: {}]
  %s12 = sld [smem:[#allocation0]]
  $region74: #{tpu_custom_call.1} parent=0
    _
  %s14 = ssub.s32 1, %s12
  %s15 = scalar_select 0, %s14, %s12
  %v16 = vstv %s8
  %17 = vst [vmem:[#allocation2] sm:$0x1] %v16
  $region1: #{tpu_custom_call.1} parent=0
    #allocation3 [shape = 'u8[4096]{0}', space=vmem, size = 0x1000, scoped, tag = 'input window, operand 0, single buffered']
    #allocation4 [shape = 's32[1]{0}', space=sflag, size = 0x4, scoped, tag = 'scoped memory for tpu_custom_call.1']
    #allocation5 [shape = 's32[1]{0}', space=sflag, size = 0x4, scoped, tag = 'scoped memory for tpu_custom_call.1']
    #allocation6 [shape = 'u8[16384]{0}', space=vmem, size = 0x4000, scoped, tag = 'input window, operand 1, single buffered']
    #allocation7 [shape = 's32[1]{0}', space=sflag, size = 0x4, scoped, tag = 'scoped memory for tpu_custom_call.1']
    #allocation8 [shape = 'u8[32768]{0}', space=vmem, size = 0x8000, scoped, tag = 'input window, operand 3, single buffered']
    #allocation9 [shape = 'u8[65536]{0}', space=vmem, size = 0x10000, scoped, tag = 'input window, operand 5, single buffered']
    #allocation10 [shape = 's32[1]{0}', space=sflag, size = 0x4, scoped, tag = 'scoped memory for tpu_custom_call.1']
    #allocation11 [shape = 'u8[65536]{0}', space=vmem, size = 0x10000, scoped, tag = 'input window, operand 9, single buffered']
    #allocation12 [shape = 'u8[4096]{0}', space=vmem, size = 0x1000, scoped, tag = 'output window, operand 0, single buffered']
    %18 = vsyncpa [#allocation4], 0
    %19 = vsyncpa [#allocation7], 0
    %20 = vsyncpa [#allocation10], 0
    %21 = vsyncpa [#allocation5], 0
    // Predicated region
    $region2: #{tpu_custom_call.1} parent=1 // pred_check
      _
    $region3: #{tpu_custom_call.1} parent=1 // pred_check_branch
      %23 = sbr.rel (0) target = $region5
    $region4: #{tpu_custom_call.1} parent=1 // pred_region
      %s25 = ssub.s32 128, 128
      %26 = vsyncadd [#allocation4], %s25
      %s28 = sshll.u32 [#allocation3], 4
      %s29 = int_to_ptr.vmem [resolvable:$true] %s28
      %31 = dma.hbm_to_vmem [thread:$0]  %s0, 128, %s29, [#allocation4]
    $region5: #{tpu_custom_call.1} parent=1 // pred_fallthru
      _
    // Predicated region
    $region6: #{tpu_custom_call.1} parent=1 // pred_check
      _
    $region7: #{tpu_custom_call.1} parent=1 // pred_check_branch
      %33 = sbr.rel (0) target = $region9
    $region8: #{tpu_custom_call.1} parent=1 // pred_region
      %s35 = ssub.s32 512, 512
      %36 = vsyncadd [#allocation7], %s35
      %s37 = sshll.u32 [#allocation6], 4
      %s38 = int_to_ptr.vmem [resolvable:$true] %s37
      %43 = dma.hbm_to_vmem [thread:$0]  %s1, 512, %s38, [#allocation7], 128, 128, 8
    $region9: #{tpu_custom_call.1} parent=1 // pred_fallthru
      _
    // Predicated region
    $region10: #{tpu_custom_call.1} parent=1 // pred_check
      _
    $region11: #{tpu_custom_call.1} parent=1 // pred_check_branch
      %45 = sbr.rel (0) target = $region13
    $region12: #{tpu_custom_call.1} parent=1 // pred_region
      _
    $region13: #{tpu_custom_call.1} parent=1 // pred_fallthru
      _
    // Predicated region
    $region14: #{tpu_custom_call.1} parent=1 // pred_check
      _
    $region15: #{tpu_custom_call.1} parent=1 // pred_check_branch
      %47 = sbr.rel (0) target = $region17
    $region16: #{tpu_custom_call.1} parent=1 // pred_region
      %s49 = ssub.s32 1024, 1024
      %50 = vsyncadd [#allocation7], %s49
      %s51 = sshll.u32 [#allocation8], 4
      %s52 = int_to_ptr.vmem [resolvable:$true] %s51
      %57 = dma.hbm_to_vmem [thread:$0]  %s3, 1024, %s52, [#allocation7], 128, 128, 8
    $region17: #{tpu_custom_call.1} parent=1 // pred_fallthru
      _
    // Predicated region
    $region18: #{tpu_custom_call.1} parent=1 // pred_check
      _
    $region19: #{tpu_custom_call.1} parent=1 // pred_check_branch
      %59 = sbr.rel (0) target = $region21
    $region20: #{tpu_custom_call.1} parent=1 // pred_region
      _
    $region21: #{tpu_custom_call.1} parent=1 // pred_fallthru
      _
    // Predicated region
    $region22: #{tpu_custom_call.1} parent=1 // pred_check
      _
    $region23: #{tpu_custom_call.1} parent=1 // pred_check_branch
      %61 = sbr.rel (0) target = $region25
    $region24: #{tpu_custom_call.1} parent=1 // pred_region
      %s63 = ssub.s32 2048, 2048
      %64 = vsyncadd [#allocation10], %s63
      %s65 = sshll.u32 [#allocation9], 4
      %s66 = int_to_ptr.vmem [resolvable:$true] %s65
      %71 = dma.hbm_to_vmem [thread:$0]  %s5, 2048, %s66, [#allocation10], 256, 256, 16
    $region25: #{tpu_custom_call.1} parent=1 // pred_fallthru
      _
    // Predicated region
    $region26: #{tpu_custom_call.1} parent=1 // pred_check
      _
    $region27: #{tpu_custom_call.1} parent=1 // pred_check_branch
      %73 = sbr.rel (0) target = $region29
    $region28: #{tpu_custom_call.1} parent=1 // pred_region
      _
    $region29: #{tpu_custom_call.1} parent=1 // pred_fallthru
      _
    // Predicated region
    $region30: #{tpu_custom_call.1} parent=1 // pred_check
      _
    $region31: #{tpu_custom_call.1} parent=1 // pred_check_branch
      %75 = sbr.rel (0) target = $region33
    $region32: #{tpu_custom_call.1} parent=1 // pred_region
      _
    $region33: #{tpu_custom_call.1} parent=1 // pred_fallthru
      _
    // Predicated region
    $region34: #{tpu_custom_call.1} parent=1 // pred_check
      _
    $region35: #{tpu_custom_call.1} parent=1 // pred_check_branch
      %77 = sbr.rel (0) target = $region37
    $region36: #{tpu_custom_call.1} parent=1 // pred_region
      _
    $region37: #{tpu_custom_call.1} parent=1 // pred_fallthru
      _
    // Predicated region
    $region38: #{tpu_custom_call.1} parent=1 // pred_check
      _
    $region39: #{tpu_custom_call.1} parent=1 // pred_check_branch
      %79 = sbr.rel (0) target = $region41
    $region40: #{tpu_custom_call.1} parent=1 // pred_region
      %s81 = ssub.s32 2048, 2048
      %82 = vsyncadd [#allocation10], %s81
      %s83 = sshll.u32 [#allocation11], 4
      %s84 = int_to_ptr.vmem [resolvable:$true] %s83
      %89 = dma.hbm_to_vmem [thread:$0]  %s9, 2048, %s84, [#allocation10], 128, 128, 8
    $region41: #{tpu_custom_call.1} parent=1 // pred_fallthru
      _
    // Predicated region
    $region42: #{tpu_custom_call.1} parent=1 // pred_check
      _
    $region43: #{tpu_custom_call.1} parent=1 // pred_check_branch
      %91 = sbr.rel (0) target = $region45
    $region44: #{tpu_custom_call.1} parent=1 // pred_region
      _
    $region45: #{tpu_custom_call.1} parent=1 // pred_fallthru
      _
    // Predicated region
    $region46: #{tpu_custom_call.1} parent=1 // pred_check
      _
    $region47: #{tpu_custom_call.1} parent=1 // pred_check_branch
      %93 = sbr.rel (0) target = $region49
    $region48: #{tpu_custom_call.1} parent=1 // pred_region
      %94 = dma.done [#allocation4], 128
    $region49: #{tpu_custom_call.1} parent=1 // pred_fallthru
      _
    // Predicated region
    $region50: #{tpu_custom_call.1} parent=1 // pred_check
      _
    $region51: #{tpu_custom_call.1} parent=1 // pred_check_branch
      %96 = sbr.rel (0) target = $region53
    $region52: #{tpu_custom_call.1} parent=1 // pred_region
      %97 = dma.done [#allocation7], 512
    $region53: #{tpu_custom_call.1} parent=1 // pred_fallthru
      _
    // Predicated region
    $region54: #{tpu_custom_call.1} parent=1 // pred_check
      _
    $region55: #{tpu_custom_call.1} parent=1 // pred_check_branch
      %99 = sbr.rel (0) target = $region57
    $region56: #{tpu_custom_call.1} parent=1 // pred_region
      %100 = dma.done [#allocation7], 1024
    $region57: #{tpu_custom_call.1} parent=1 // pred_fallthru
      _
    // Predicated region
    $region58: #{tpu_custom_call.1} parent=1 // pred_check
      _
    $region59: #{tpu_custom_call.1} parent=1 // pred_check_branch
      %102 = sbr.rel (0) target = $region61
    $region60: #{tpu_custom_call.1} parent=1 // pred_region
      %103 = dma.done [#allocation10], 2048
    $region61: #{tpu_custom_call.1} parent=1 // pred_fallthru
      _
    // Predicated region
    $region62: #{tpu_custom_call.1} parent=1 // pred_check
      _
    $region63: #{tpu_custom_call.1} parent=1 // pred_check_branch
      %105 = sbr.rel (0) target = $region65
    $region64: #{tpu_custom_call.1} parent=1 // pred_region
      %106 = dma.done [#allocation10], 2048
    $region65: #{tpu_custom_call.1} parent=1 // pred_fallthru
      _
    %v107 = vld [vmem:[#allocation3] sm:$0xff]
    %v108 = vld [vmem:[#allocation6] sm:$0xff]
    %v109 = vld [vmem:[#allocation6 + $0x8] sm:$0xff]
    %v110 = vld [vmem:[#allocation6 + $0x10] sm:$0xff]
    %v111 = vld [vmem:[#allocation6 + $0x18] sm:$0xff]
    %v112 = vld [vmem:[%s2] sm:$0x1]
    %v114 = vlaneseq
    %v115 = vshrl.u32 %v114, 7
    %v116 = vsub.s32 0, %v115
    %v117 = vrot.slane %v112, %v116
    %vm119 = vcmask 261120
    %v121 = vsel %vm119, %v107, 0
    %123 = vmatprep.subr.mxu0 0.0
    %124 = vmatpush1.msra.mxu0 0.0
    %125 = vmatprep.subr.mxu0 0.0
    %126 = vmatpush1.msra.mxu0 0.0
    %127 = vmatprep.subr.mxu0 0.0
    %128 = vmatpush1.msra.mxu0 0.0
    %129 = vmatprep.subr.mxu0 0.0
    %130 = vmatpush1.msra.mxu0 0.0
    %131 = vmatprep.subr.mxu0 0.0
    %132 = vmatpush1.msra.mxu0 0.0
    %133 = vmatprep.subr.mxu0 0.0
    %134 = vmatpush1.msra.mxu0 0.0
    %135 = vmatprep.subr.mxu0 0.0
    %136 = vmatpush1.msra.mxu0 0.0
    %137 = vmatprep.subr.mxu0 0.0
    %138 = vmatpush1.msra.mxu0 0.0
    %139 = vmatprep.subr.mxu0 0.0
    %140 = vmatpush1.msra.mxu0 0.0
    %141 = vmatprep.subr.mxu0 0.0
    %142 = vmatpush1.msra.mxu0 0.0
    %143 = vmatprep.subr.mxu0 0.0
    %144 = vmatpush1.msra.mxu0 0.0
    %145 = vmatprep.subr.mxu0 0.0
    %146 = vmatpush1.msra.mxu0 0.0
    %147 = vmatprep.subr.mxu0 0.0
    %148 = vmatpush1.msra.mxu0 %v111
    %149 = vmatprep.subr.mxu0 0.0
    %150 = vmatpush1.msra.mxu0 %v110
    %151 = vmatprep.subr.mxu0 0.0
    %152 = vmatpush1.msra.mxu0 %v109
    %153 = vmatprep.subr.mxu0 0.0
    %154 = vmatpush1.msra.mxu0 %v108
    %155 = vmatprep.subr.mxu0 0.0
    %156 = vmatpush2.msra.mxu0 0.0
    %157 = vmatprep.subr.mxu0 0.0
    %158 = vmatpush2.msra.mxu0 0.0
    %159 = vmatprep.subr.mxu0 0.0
    %160 = vmatpush2.msra.mxu0 0.0
    %161 = vmatprep.subr.mxu0 0.0
    %162 = vmatpush2.msra.mxu0 0.0
    %163 = vmatprep.subr.mxu0 0.0
    %164 = vmatpush2.msra.mxu0 0.0
    %165 = vmatprep.subr.mxu0 0.0
    %166 = vmatpush2.msra.mxu0 0.0
    %167 = vmatprep.subr.mxu0 0.0
    %168 = vmatpush2.msra.mxu0 0.0
    %169 = vmatprep.subr.mxu0 0.0
    %170 = vmatpush2.msra.mxu0 0.0
    %171 = vmatprep.subr.mxu0 0.0
    %172 = vmatpush2.msra.mxu0 0.0
    %173 = vmatprep.subr.mxu0 0.0
    %174 = vmatpush2.msra.mxu0 0.0
    %175 = vmatprep.subr.mxu0 0.0
    %176 = vmatpush2.msra.mxu0 0.0
    %177 = vmatprep.subr.mxu0 0.0
    %178 = vmatpush2.msra.mxu0 0.0
    %179 = vmatprep.subr.mxu0 0.0
    %180 = vmatpush2.msra.mxu0 0.0
    %181 = vmatprep.subr.mxu0 0.0
    %182 = vmatpush2.msra.mxu0 0.0
    %183 = vmatprep.subr.mxu0 0.0
    %184 = vmatpush2.msra.mxu0 0.0
    %185 = vmatprep.subr.mxu0 0.0
    %186 = vmatpush2.msra.mxu0 0.0
    %187 = vmatprep.mubr.f32.mxu0 0.0
    %188 = vmatmul.mubr.f32.gmra.mxu0 %v121
    %v189 = vpop.f32.mrf.mxu0
    %v190 = vadd.f32 %v117, %v189
    %v191 = vpop.f32.mrf.mxu0
    %192 = vdwg.mxu0
    %vm193 = vcmp.ge.f32.partialorder %v190, 0.0
    %v194 = vmul.f32 %v190, 0.01
    %v195 = vsel %vm193, %v190, %v194
    %v196 = vld [vmem:[#allocation8] sm:$0xff]
    %v197 = vld [vmem:[#allocation8 + $0x8] sm:$0xff]
    %v198 = vld [vmem:[#allocation8 + $0x10] sm:$0xff]
    %v199 = vld [vmem:[#allocation8 + $0x18] sm:$0xff]
    %v200 = vld [vmem:[#allocation8 + $0x20] sm:$0xff]
    %v201 = vld [vmem:[#allocation8 + $0x28] sm:$0xff]
    %v202 = vld [vmem:[#allocation8 + $0x30] sm:$0xff]
    %v203 = vld [vmem:[#allocation8 + $0x38] sm:$0xff]
    %v204 = vld [vmem:[%s4] sm:$0x1]
    %v206 = vlaneseq
    %v207 = vshrl.u32 %v206, 7
    %v208 = vsub.s32 0, %v207
    %v209 = vrot.slane %v204, %v208
    %vm211 = vcmask 523264
    %v213 = vsel %vm211, %v195, 0
    %215 = vmatprep.subr.mxu0 0.0
    %216 = vmatpush1.msra.mxu0 0.0
    %217 = vmatprep.subr.mxu0 0.0
    %218 = vmatpush1.msra.mxu0 0.0
    %219 = vmatprep.subr.mxu0 0.0
    %220 = vmatpush1.msra.mxu0 0.0
    %221 = vmatprep.subr.mxu0 0.0
    %222 = vmatpush1.msra.mxu0 0.0
    %223 = vmatprep.subr.mxu0 0.0
    %224 = vmatpush1.msra.mxu0 0.0
    %225 = vmatprep.subr.mxu0 0.0
    %226 = vmatpush1.msra.mxu0 0.0
    %227 = vmatprep.subr.mxu0 0.0
    %228 = vmatpush1.msra.mxu0 0.0
    %229 = vmatprep.subr.mxu0 0.0
    %230 = vmatpush1.msra.mxu0 0.0
    %231 = vmatprep.subr.mxu0 0.0
    %232 = vmatpush1.msra.mxu0 %v203
    %233 = vmatprep.subr.mxu0 0.0
    %234 = vmatpush1.msra.mxu0 %v202
    %235 = vmatprep.subr.mxu0 0.0
    %236 = vmatpush1.msra.mxu0 %v201
    %237 = vmatprep.subr.mxu0 0.0
    %238 = vmatpush1.msra.mxu0 %v200
    %239 = vmatprep.subr.mxu0 0.0
    %240 = vmatpush1.msra.mxu0 %v199
    %241 = vmatprep.subr.mxu0 0.0
    %242 = vmatpush1.msra.mxu0 %v198
    %243 = vmatprep.subr.mxu0 0.0
    %244 = vmatpush1.msra.mxu0 %v197
    %245 = vmatprep.subr.mxu0 0.0
    %246 = vmatpush1.msra.mxu0 %v196
    %247 = vmatprep.subr.mxu0 0.0
    %248 = vmatpush2.msra.mxu0 0.0
    %249 = vmatprep.subr.mxu0 0.0
    %250 = vmatpush2.msra.mxu0 0.0
    %251 = vmatprep.subr.mxu0 0.0
    %252 = vmatpush2.msra.mxu0 0.0
    %253 = vmatprep.subr.mxu0 0.0
    %254 = vmatpush2.msra.mxu0 0.0
    %255 = vmatprep.subr.mxu0 0.0
    %256 = vmatpush2.msra.mxu0 0.0
    %257 = vmatprep.subr.mxu0 0.0
    %258 = vmatpush2.msra.mxu0 0.0
    %259 = vmatprep.subr.mxu0 0.0
    %260 = vmatpush2.msra.mxu0 0.0
    %261 = vmatprep.subr.mxu0 0.0
    %262 = vmatpush2.msra.mxu0 0.0
    %263 = vmatprep.subr.mxu0 0.0
    %264 = vmatpush2.msra.mxu0 0.0
    %265 = vmatprep.subr.mxu0 0.0
    %266 = vmatpush2.msra.mxu0 0.0
    %267 = vmatprep.subr.mxu0 0.0
    %268 = vmatpush2.msra.mxu0 0.0
    %269 = vmatprep.subr.mxu0 0.0
    %270 = vmatpush2.msra.mxu0 0.0
    %271 = vmatprep.subr.mxu0 0.0
    %272 = vmatpush2.msra.mxu0 0.0
    %273 = vmatprep.subr.mxu0 0.0
    %274 = vmatpush2.msra.mxu0 0.0
    %275 = vmatprep.subr.mxu0 0.0
    %276 = vmatpush2.msra.mxu0 0.0
    %277 = vmatprep.subr.mxu0 0.0
    %278 = vmatpush2.msra.mxu0 0.0
    %279 = vmatprep.mubr.f32.mxu0 0.0
    %280 = vmatmul.mubr.f32.gmra.mxu0 %v213
    %v281 = vpop.f32.mrf.mxu0
    %v282 = vadd.f32 %v209, %v281
    %v283 = vpop.f32.mrf.mxu0
    %284 = vdwg.mxu0
    %v285 = vld [vmem:[#allocation9] sm:$0xff]
    %v286 = vld [vmem:[#allocation9 + $0x8] sm:$0xff]
    %v287 = vld [vmem:[#allocation9 + $0x10] sm:$0xff]
    %v288 = vld [vmem:[#allocation9 + $0x18] sm:$0xff]
    %v289 = vld [vmem:[#allocation9 + $0x20] sm:$0xff]
    %v290 = vld [vmem:[#allocation9 + $0x28] sm:$0xff]
    %v291 = vld [vmem:[#allocation9 + $0x30] sm:$0xff]
    %v292 = vld [vmem:[#allocation9 + $0x38] sm:$0xff]
    %v293 = vld [vmem:[#allocation9 + $0x40] sm:$0xff]
    %v294 = vld [vmem:[#allocation9 + $0x48] sm:$0xff]
    %v295 = vld [vmem:[#allocation9 + $0x50] sm:$0xff]
    %v296 = vld [vmem:[#allocation9 + $0x58] sm:$0xff]
    %v297 = vld [vmem:[#allocation9 + $0x60] sm:$0xff]
    %v298 = vld [vmem:[#allocation9 + $0x68] sm:$0xff]
    %v299 = vld [vmem:[#allocation9 + $0x70] sm:$0xff]
    %v300 = vld [vmem:[#allocation9 + $0x78] sm:$0xff]
    %v301 = vld [vmem:[%s6] sm:$0x3]
    %v303 = vlaneseq
    %v304 = vshrl.u32 %v303, 7
    %v305 = vsub.s32 0, %v304
    %v306 = vrot.slane %v301, %v305
    %v307 = vlaneseq
    %v308 = vshrl.u32 %v307, 7
    %v309 = vsub.s32 1, %v308
    %v310 = vrot.slane %v301, %v309
    %v314 = vsel %vm211, %v282, 0
    %316 = vmatprep.subr.mxu0 0.0
    %317 = vmatpush1.msra.mxu0 0.0
    %318 = vmatprep.subr.mxu0 0.0
    %319 = vmatpush1.msra.mxu0 0.0
    %320 = vmatprep.subr.mxu0 0.0
    %321 = vmatpush1.msra.mxu0 0.0
    %322 = vmatprep.subr.mxu0 0.0
    %323 = vmatpush1.msra.mxu0 0.0
    %324 = vmatprep.subr.mxu0 0.0
    %325 = vmatpush1.msra.mxu0 0.0
    %326 = vmatprep.subr.mxu0 0.0
    %327 = vmatpush1.msra.mxu0 0.0
    %328 = vmatprep.subr.mxu0 0.0
    %329 = vmatpush1.msra.mxu0 0.0
    %330 = vmatprep.subr.mxu0 0.0
    %331 = vmatpush1.msra.mxu0 0.0
    %332 = vmatprep.subr.mxu0 %v300
    %333 = vmatpush1.msra.mxu0 %v299
    %334 = vmatprep.subr.mxu0 %v298
    %335 = vmatpush1.msra.mxu0 %v297
    %336 = vmatprep.subr.mxu0 %v296
    %337 = vmatpush1.msra.mxu0 %v295
    %338 = vmatprep.subr.mxu0 %v294
    %339 = vmatpush1.msra.mxu0 %v293
    %340 = vmatprep.subr.mxu0 %v292
    %341 = vmatpush1.msra.mxu0 %v291
    %342 = vmatprep.subr.mxu0 %v290
    %343 = vmatpush1.msra.mxu0 %v289
    %344 = vmatprep.subr.mxu0 %v288
    %345 = vmatpush1.msra.mxu0 %v287
    %346 = vmatprep.subr.mxu0 %v286
    %347 = vmatpush1.msra.mxu0 %v285
    %348 = vmatprep.subr.mxu0 0.0
    %349 = vmatpush2.msra.mxu0 0.0
    %350 = vmatprep.subr.mxu0 0.0
    %351 = vmatpush2.msra.mxu0 0.0
    %352 = vmatprep.subr.mxu0 0.0
    %353 = vmatpush2.msra.mxu0 0.0
    %354 = vmatprep.subr.mxu0 0.0
    %355 = vmatpush2.msra.mxu0 0.0
    %356 = vmatprep.subr.mxu0 0.0
    %357 = vmatpush2.msra.mxu0 0.0
    %358 = vmatprep.subr.mxu0 0.0
    %359 = vmatpush2.msra.mxu0 0.0
    %360 = vmatprep.subr.mxu0 0.0
    %361 = vmatpush2.msra.mxu0 0.0
    %362 = vmatprep.subr.mxu0 0.0
    %363 = vmatpush2.msra.mxu0 0.0
    %364 = vmatprep.subr.mxu0 0.0
    %365 = vmatpush2.msra.mxu0 0.0
    %366 = vmatprep.subr.mxu0 0.0
    %367 = vmatpush2.msra.mxu0 0.0
    %368 = vmatprep.subr.mxu0 0.0
    %369 = vmatpush2.msra.mxu0 0.0
    %370 = vmatprep.subr.mxu0 0.0
    %371 = vmatpush2.msra.mxu0 0.0
    %372 = vmatprep.subr.mxu0 0.0
    %373 = vmatpush2.msra.mxu0 0.0
    %374 = vmatprep.subr.mxu0 0.0
    %375 = vmatpush2.msra.mxu0 0.0
    %376 = vmatprep.subr.mxu0 0.0
    %377 = vmatpush2.msra.mxu0 0.0
    %378 = vmatprep.subr.mxu0 0.0
    %379 = vmatpush2.msra.mxu0 0.0
    %380 = vmatprep.mubr.f32.mxu0 0.0
    %381 = vmatmul.mubr.f32.gmra.mxu0 %v314
    %v382 = vpop.f32.mrf.mxu0
    %v383 = vadd.f32 %v306, %v382
    %v384 = vpop.f32.mrf.mxu0
    %v385 = vadd.f32 %v310, %v384
    %386 = vdwg.mxu0
    %vm387 = vcmp.ge.f32.partialorder %v383, 0.0
    %vm388 = vcmp.ge.f32.partialorder %v385, 0.0
    %v389 = vmul.f32 %v383, 0.01
    %v390 = vmul.f32 %v385, 0.01
    %v391 = vsel %vm387, %v383, %v389
    %v392 = vsel %vm388, %v385, %v390
    %v393 = vld [vmem:[%s7] sm:$0x1]
    %v395 = vlaneseq
    %v396 = vshrl.u32 %v395, 7
    %v397 = vsub.s32 0, %v396
    %v398 = vrot.slane %v393, %v397
    %v400 = vmul.f32 %v391, %v398
    %401 = vadd.xlane.f32.xlu0 %v400
    %v402 = vpop.xlane.xlu0 %401
    %v403 = vld [vmem:[#allocation2] sm:$0x1]
    %v405 = vlaneseq
    %v406 = vshrl.u32 %v405, 7
    %v407 = vsub.s32 0, %v406
    %v408 = vrot.slane %v403, %v407
    %v410 = vadd.f32 %v402, %v408
    %v411 = vld [vmem:[#allocation11] sm:$0xff]
    %v412 = vld [vmem:[#allocation11 + $0x8] sm:$0xff]
    %v413 = vld [vmem:[#allocation11 + $0x10] sm:$0xff]
    %v414 = vld [vmem:[#allocation11 + $0x18] sm:$0xff]
    %v415 = vld [vmem:[#allocation11 + $0x20] sm:$0xff]
    %v416 = vld [vmem:[#allocation11 + $0x28] sm:$0xff]
    %v417 = vld [vmem:[#allocation11 + $0x30] sm:$0xff]
    %v418 = vld [vmem:[#allocation11 + $0x38] sm:$0xff]
    %v419 = vld [vmem:[#allocation11 + $0x40] sm:$0xff]
    %v420 = vld [vmem:[#allocation11 + $0x48] sm:$0xff]
    %v421 = vld [vmem:[#allocation11 + $0x50] sm:$0xff]
    %v422 = vld [vmem:[#allocation11 + $0x58] sm:$0xff]
    %v423 = vld [vmem:[#allocation11 + $0x60] sm:$0xff]
    %v424 = vld [vmem:[#allocation11 + $0x68] sm:$0xff]
    %v425 = vld [vmem:[#allocation11 + $0x70] sm:$0xff]
    %v426 = vld [vmem:[#allocation11 + $0x78] sm:$0xff]
    %v427 = vld [vmem:[%s10] sm:$0x1]
    %v429 = vlaneseq
    %v430 = vshrl.u32 %v429, 7
    %v431 = vsub.s32 0, %v430
    %v432 = vrot.slane %v427, %v431
    %434 = vmatprep.subr.mxu0 0.0
    %435 = vmatpush1.msra.mxu0 %v426
    %436 = vmatprep.subr.mxu0 0.0
    %437 = vmatpush1.msra.mxu0 %v425
    %438 = vmatprep.subr.mxu0 0.0
    %439 = vmatpush1.msra.mxu0 %v424
    %440 = vmatprep.subr.mxu0 0.0
    %441 = vmatpush1.msra.mxu0 %v423
    %442 = vmatprep.subr.mxu0 0.0
    %443 = vmatpush1.msra.mxu0 %v422
    %444 = vmatprep.subr.mxu0 0.0
    %445 = vmatpush1.msra.mxu0 %v421
    %446 = vmatprep.subr.mxu0 0.0
    %447 = vmatpush1.msra.mxu0 %v420
    %448 = vmatprep.subr.mxu0 0.0
    %449 = vmatpush1.msra.mxu0 %v419
    %450 = vmatprep.subr.mxu0 0.0
    %451 = vmatpush1.msra.mxu0 %v418
    %452 = vmatprep.subr.mxu0 0.0
    %453 = vmatpush1.msra.mxu0 %v417
    %454 = vmatprep.subr.mxu0 0.0
    %455 = vmatpush1.msra.mxu0 %v416
    %456 = vmatprep.subr.mxu0 0.0
    %457 = vmatpush1.msra.mxu0 %v415
    %458 = vmatprep.subr.mxu0 0.0
    %459 = vmatpush1.msra.mxu0 %v414
    %460 = vmatprep.subr.mxu0 0.0
    %461 = vmatpush1.msra.mxu0 %v413
    %462 = vmatprep.subr.mxu0 0.0
    %463 = vmatpush1.msra.mxu0 %v412
    %464 = vmatprep.subr.mxu0 0.0
    %465 = vmatpush1.msra.mxu0 %v411
    %466 = vmatprep.subr.mxu0 0.0
    %467 = vmatpush2.msra.mxu0 0.0
    %468 = vmatprep.subr.mxu0 0.0
    %469 = vmatpush2.msra.mxu0 0.0
    %470 = vmatprep.subr.mxu0 0.0
    %471 = vmatpush2.msra.mxu0 0.0
    %472 = vmatprep.subr.mxu0 0.0
    %473 = vmatpush2.msra.mxu0 0.0
    %474 = vmatprep.subr.mxu0 0.0
    %475 = vmatpush2.msra.mxu0 0.0
    %476 = vmatprep.subr.mxu0 0.0
    %477 = vmatpush2.msra.mxu0 0.0
    %478 = vmatprep.subr.mxu0 0.0
    %479 = vmatpush2.msra.mxu0 0.0
    %480 = vmatprep.subr.mxu0 0.0
    %481 = vmatpush2.msra.mxu0 0.0
    %482 = vmatprep.subr.mxu0 0.0
    %483 = vmatpush2.msra.mxu0 0.0
    %484 = vmatprep.subr.mxu0 0.0
    %485 = vmatpush2.msra.mxu0 0.0
    %486 = vmatprep.subr.mxu0 0.0
    %487 = vmatpush2.msra.mxu0 0.0
    %488 = vmatprep.subr.mxu0 0.0
    %489 = vmatpush2.msra.mxu0 0.0
    %490 = vmatprep.subr.mxu0 0.0
    %491 = vmatpush2.msra.mxu0 0.0
    %492 = vmatprep.subr.mxu0 0.0
    %493 = vmatpush2.msra.mxu0 0.0
    %494 = vmatprep.subr.mxu0 0.0
    %495 = vmatpush2.msra.mxu0 0.0
    %496 = vmatprep.subr.mxu0 0.0
    %497 = vmatpush2.msra.mxu0 0.0
    %498 = vmatprep.mubr.f32.mxu0 0.0
    %499 = vmatmul.mubr.f32.gmra.mxu0 %v392
    %v500 = vpop.f32.mrf.mxu0
    %v501 = vadd.f32 %v432, %v500
    %v502 = vpop.f32.mrf.mxu0
    %503 = vdwg.mxu0
    %504 = vadd.xlane.f32.xlu0 %v501
    %v505 = vpop.xlane.xlu0 %504
    %v506 = vmul.f32 %v505, 0.25
    %508 = vset.pattern.permute.xlu0 0
    %509 = vperm.xlu0 %508, %v410
    %v510 = vpop.permute.xlu0 %509
    %v512 = vadd.f32 %v510, %v501
    %v513 = vsub.f32 %v512, %v506
    %514 = vst [vmem:[#allocation12] sm:$0xff] %v513
    // Predicated region
    $region66: #{tpu_custom_call.1} parent=1 // pred_check
      _
    $region67: #{tpu_custom_call.1} parent=1 // pred_check_branch
      %516 = sbr.rel (0) target = $region69
    $region68: #{tpu_custom_call.1} parent=1 // pred_region
      %s518 = ssub.s32 128, 128
      %519 = vsyncadd [#allocation5], %s518
      %s521 = sshll.u32 [#allocation12], 4
      %s522 = int_to_ptr.vmem [resolvable:$true] %s521
      %524 = dma.vmem_to_hbm [thread:$0]  %s522, 128, %s11, [#allocation5]
    $region69: #{tpu_custom_call.1} parent=1 // pred_fallthru
      _
    // Predicated region
    $region70: #{tpu_custom_call.1} parent=1 // pred_check
      _
    $region71: #{tpu_custom_call.1} parent=1 // pred_check_branch
      %526 = sbr.rel (0) target = $region73
    $region72: #{tpu_custom_call.1} parent=1 // pred_region
      %527 = dma.done [#allocation5], 128
    $region73: #{tpu_custom_call.1} parent=1 // pred_fallthru
      _
    %528 = vsyncpa [#allocation4], 1
    %529 = vsyncpa [#allocation7], 1
    %530 = vsyncpa [#allocation10], 1
    %531 = vsyncpa [#allocation5], 1

</llo_original>
